<compile_context>
chip_gen: v6e
topology: v6e:2x2x1
jax: 0.10.0
libtpu: 0.0.40
codegen_flags: <defaults>
</compile_context>

<pallas_src>
import functools

import numpy as np
import jax
import jax.numpy as jnp
from jax.experimental import pallas as pl
from jax.experimental.pallas import tpu as pltpu


# ----------------------------------------------------------------------------
# Graph tools (numpy) -- mirror MS-G3D graph/tools.py + build_spatial_temporal_graph
# ----------------------------------------------------------------------------
def k_adjacency(A, k, with_self=False, self_factor=1):
    I = np.eye(len(A), dtype=A.dtype)
    if k == 0:
        return I
    Ak = np.minimum(np.linalg.matrix_power(A + I, k), 1) \
       - np.minimum(np.linalg.matrix_power(A + I, k - 1), 1)
    if with_self:
        Ak += (self_factor * I)
    return Ak


def normalize_adjacency_matrix(A):
    node_degrees = A.sum(-1)
    safe = np.where(node_degrees > 0, node_degrees, 1.0)
    degs_inv_sqrt = np.where(node_degrees > 0, safe ** -0.5, 0.0)
    norm_degs_matrix = np.eye(len(node_degrees)) * degs_inv_sqrt
    return (norm_degs_matrix @ A @ norm_degs_matrix).astype(np.float32)


def build_spatial_temporal_graph(A_binary, window_size):
    A_binary_with_I = A_binary + np.eye(len(A_binary), dtype=A_binary.dtype)
    A_large = np.tile(A_binary_with_I, (window_size, window_size)).copy()
    return A_large


# ----------------------------------------------------------------------------
# UnfoldTemporalWindows (pure gather -> plain JAX glue)
# ----------------------------------------------------------------------------
def unfold_temporal(x, window_size, stride, dilation):
    # x: (N, C, T, V) -> (N, C, T_out, window_size * V)
    N, C, T, V = x.shape
    pad = (window_size + (window_size - 1) * (dilation - 1) - 1) // 2
    xp = jnp.pad(x, ((0, 0), (0, 0), (pad, pad), (0, 0)))
    T_pad = T + 2 * pad
    T_out = (T_pad - dilation * (window_size - 1) - 1) // stride + 1
    idx = (jnp.arange(T_out)[:, None] * stride
           + jnp.arange(window_size)[None, :] * dilation)        # (T_out, W)
    xw = xp[:, :, idx, :]                                        # (N, C, T_out, W, V)
    return xw.reshape(N, C, T_out, window_size * V), T_out


# ----------------------------------------------------------------------------
# Pallas kernels
# ----------------------------------------------------------------------------
def _agg_kernel(x_ref, a_ref, o_ref):
    # f32 inputs (preserves A_res fidelity), f32 MXU accumulation, bf16 store.
    o_ref[...] = jnp.dot(x_ref[...], a_ref[...],
                         preferred_element_type=jnp.float32).astype(o_ref.dtype)


def _mlp2_kernel(x_ref, w1_ref, b1_ref, w2_ref, b2_ref, o_ref):
    # y = relu(x @ w1 + b1) @ w2 + b2   (all BN scales / conv biases pre-folded).
    # bf16 MXU operands, f32 accumulation, f32 elementwise epilogue (v5e-safe).
    h = jnp.dot(x_ref[...], w1_ref[...], preferred_element_type=jnp.float32)
    h = jnp.maximum(h + b1_ref[...], 0.0)
    # hidden re-quantized to bf16 exactly once for the second MXU pass (inference).
    y = jnp.dot(h.astype(w2_ref.dtype), w2_ref[...],
                preferred_element_type=jnp.float32)
    o_ref[...] = y + b2_ref[...]


# ----------------------------------------------------------------------------
# Tiling helpers
# ----------------------------------------------------------------------------
_VMEM_LIMIT_BYTES = 48 * 1024 * 1024   # explicit budget: < v7x 64 MiB physical VMEM


def _round_up(v, m):
    return ((v + m - 1) // m) * m


def _cdiv(a, b):
    return (a + b - 1) // b


def _row_tile(M, block_m):
    """Largest 8-multiple row tile <= block_m; split so the 'parallel' row grid
    has >= 2 blocks whenever the problem allows (keeps both v7x TensorCores busy;
    no effect on single-TC v5e/v6e)."""
    bm = min(_round_up(block_m, 8), _round_up(M, 8))
    if _cdiv(M, bm) < 2 and M > 8:
        bm = _round_up(_cdiv(M, 2), 8)
    return bm


# ----------------------------------------------------------------------------
# Pallas wrappers
# ----------------------------------------------------------------------------
def graph_agg_pallas(x, a, *, block_m=2048):
    """out = (x @ a) in bf16.  f32 operands / f32 MXU accumulation, lane-dense
    (128-padded) output columns, bf16 HBM writeback."""
    M, K = x.shape
    K2, Ncol = a.shape
    assert K == K2
    N_pad = _round_up(Ncol, 128)
    if N_pad != Ncol:
        a = jnp.pad(a, ((0, 0), (0, N_pad - Ncol)))
    bm = _row_tile(M, block_m)
    out = pl.pallas_call(
        _agg_kernel,
        out_shape=jax.ShapeDtypeStruct((M, N_pad), jnp.bfloat16),
        grid=(pl.cdiv(M, bm),),
        in_specs=[
            pl.BlockSpec((bm, K), lambda i: (i, 0)),
            pl.BlockSpec((K, N_pad), lambda i: (0, 0)),
        ],
        out_specs=pl.BlockSpec((bm, N_pad), lambda i: (i, 0)),
        compiler_params=pltpu.CompilerParams(
            dimension_semantics=("parallel",),
            vmem_limit_bytes=_VMEM_LIMIT_BYTES),
    )(x, a)
    return out[:, :Ncol]


def mlp2_pallas(x, w1, b1, w2, b2, *, block_m=2048):
    """out = relu(x @ w1 + b1) @ w2 + b2, single fused Pallas kernel.
    x is expected to already be bf16 (no extra convert pass is emitted)."""
    M, K = x.shape
    K1, H = w1.shape
    H2, Ncol = w2.shape
    assert K == K1 and H == H2
    H_pad = _round_up(H, 128)
    N_pad = _round_up(Ncol, 128)
    if H_pad != H:
        w1 = jnp.pad(w1, ((0, 0), (0, H_pad - H)))
        b1 = jnp.pad(b1, ((0, H_pad - H),))
        w2 = jnp.pad(w2, ((0, H_pad - H), (0, 0)))
    if N_pad != Ncol:
        w2 = jnp.pad(w2, ((0, 0), (0, N_pad - Ncol)))
        b2 = jnp.pad(b2, ((0, N_pad - Ncol),))
    bm = _row_tile(M, block_m)
    out = pl.pallas_call(
        _mlp2_kernel,
        out_shape=jax.ShapeDtypeStruct((M, N_pad), jnp.float32),
        grid=(pl.cdiv(M, bm),),
        in_specs=[
            pl.BlockSpec((bm, K), lambda i: (i, 0)),
            pl.BlockSpec((K, H_pad), lambda i: (0, 0)),
            pl.BlockSpec((1, H_pad), lambda i: (0, 0)),
            pl.BlockSpec((H_pad, N_pad), lambda i: (0, 0)),
            pl.BlockSpec((1, N_pad), lambda i: (0, 0)),
        ],
        out_specs=pl.BlockSpec((bm, N_pad), lambda i: (i, 0)),
        compiler_params=pltpu.CompilerParams(
            dimension_semantics=("parallel",),
            vmem_limit_bytes=_VMEM_LIMIT_BYTES),
    )(x.astype(jnp.bfloat16),            # no-op: x arrives in bf16 from Stage A
      w1.astype(jnp.bfloat16),
      b1.reshape(1, H_pad).astype(jnp.float32),
      w2.astype(jnp.bfloat16),
      b2.reshape(1, N_pad).astype(jnp.float32))
    return out[:, :Ncol]


# ----------------------------------------------------------------------------
# MS_G3D forward (Pallas) -- embed_factor=1 path (in1x1 = Identity)
# ----------------------------------------------------------------------------
def ms_g3d_pallas_forward(x, params, cfg, *, block_m=2048):
    N, Cin, T, V = x.shape
    W = cfg["window_size"]
    S = cfg["num_scales"]
    Cout = cfg["out_channels"]
    eps = 1e-5

    # in1x1 = Identity (embed_factor == 1)
    x_unf, T_out = unfold_temporal(x, W, cfg["window_stride"], cfg["window_dilation"])
    V_large = W * V

    # ---- Stage A: graph aggregation  agg = einsum('vu,nctu->nctv', A, x_unf) ----
    A = params["A_scales"] + params["A_res"]                     # f32 (S*V_large, V_large)
    xa = x_unf.reshape(N * Cin * T_out, V_large)                 # f32, no cast pass
    agg = graph_agg_pallas(xa, A.T, block_m=block_m)             # bf16 (N*Cin*T_out, S*V_large)

    # layout glue: one fused slice+transpose pass over the bf16 intermediate.
    agg = agg.reshape(N, Cin, T_out, S, W, V)
    X = jnp.transpose(agg, (0, 2, 5, 4, 3, 1)).reshape(N * T_out * V, W * S * Cin)

    # ---- Stage B+C fused: MLP(1x1 conv)+BN+ReLU  then  out_conv(1,W,1)+out_bn ----
    Ce = params["mlp_w"].shape[0]
    scale1 = params["bn1_gamma"] / jnp.sqrt(params["bn1_var"] + eps)
    shift1 = params["bn1_beta"] + (params["mlp_b"] - params["bn1_mean"]) * scale1
    scale2 = params["bn2_gamma"] / jnp.sqrt(params["bn2_var"] + eps)
    shift2 = params["bn2_beta"] + (params["conv3_b"] - params["bn2_mean"]) * scale2

    # W1: block-diagonal over the temporal window, scale1 folded into its columns.
    base1 = (params["mlp_w"] * scale1[:, None]).T                # (S*Cin, Ce)
    W1 = jnp.kron(jnp.eye(W, dtype=base1.dtype), base1)          # (W*S*Cin, W*Ce)
    b1 = jnp.tile(shift1, W)                                     # (W*Ce,)
    # W2: out_conv weights with scale2 folded into its columns.
    W2 = (jnp.transpose(params["conv3_w"], (2, 1, 0)).reshape(W * Ce, Cout)
          * scale2[None, :])                                     # (W*Ce, Cout)
    b2 = shift2                                                  # (Cout,)

    y = mlp2_pallas(X, W1, b1, W2, b2, block_m=block_m)          # (N*T_out*V, Cout) f32
    y = y.reshape(N, T_out, V, Cout)
    return jnp.transpose(y, (0, 3, 1, 2))                        # (N, Cout, T_out, V)


# ----------------------------------------------------------------------------
# Pure-JAX reference (mirrors the PyTorch forward, eval-mode BN) for checking
# ----------------------------------------------------------------------------
def ms_g3d_reference(x, params, cfg):
    N, Cin, T, V = x.shape
    W = cfg["window_size"]
    S = cfg["num_scales"]
    Cout = cfg["out_channels"]
    eps = 1e-5
    hp = jax.lax.Precision.HIGHEST

    x_unf, T_out = unfold_temporal(x, W, cfg["window_stride"], cfg["window_dilation"])
    V_large = W * V
    A = params["A_scales"] + params["A_res"]
    agg = jnp.einsum("vu,nctu->nctv", A, x_unf, precision=hp)
    agg = agg.reshape(N, Cin, T_out, S, V_large)
    agg = jnp.transpose(agg, (0, 3, 1, 2, 4)).reshape(N, S * Cin, T_out, V_large)

    h = jnp.einsum("oc,nctv->notv", params["mlp_w"], agg, precision=hp)
    h = h + params["mlp_b"][None, :, None, None]
    h = (h - params["bn1_mean"][None, :, None, None]) \
        / jnp.sqrt(params["bn1_var"][None, :, None, None] + eps) \
        * params["bn1_gamma"][None, :, None, None] + params["bn1_beta"][None, :, None, None]
    h = jnp.maximum(h, 0.0)

    Ce = params["mlp_w"].shape[0]
    x5 = h.reshape(N, Ce, T_out, W, V)
    y = jnp.einsum("ocw,nctwv->notv", params["conv3_w"], x5, precision=hp)
    y = y + params["conv3_b"][None, :, None, None]
    y = (y - params["bn2_mean"][None, :, None, None]) \
        / jnp.sqrt(params["bn2_var"][None, :, None, None] + eps) \
        * params["bn2_gamma"][None, :, None, None] + params["bn2_beta"][None, :, None, None]
    return y


# ----------------------------------------------------------------------------
if __name__ == "__main__":
    # Small configuration (embed_factor=1, in_channels=3 => embed_channels_out=out_channels)
    cfg = dict(in_channels=3, out_channels=16, num_scales=2,
               window_size=3, window_stride=1, window_dilation=1)
    N, Cin, T, V = 2, cfg["in_channels"], 8, 5
    W, S, Cout = cfg["window_size"], cfg["num_scales"], cfg["out_channels"]
    V_large = W * V
    Ce = Cout  # embed_channels_out (in_channels == 3 path)

    # A_binary: small chain skeleton graph with 5 joints
    A_binary = np.zeros((V, V), dtype=np.float32)
    for i in range(V - 1):
        A_binary[i, i + 1] = 1.0
        A_binary[i + 1, i] = 1.0

    A_large = build_spatial_temporal_graph(A_binary, W)
    A_scales = np.concatenate(
        [normalize_adjacency_matrix(k_adjacency(A_large, k, with_self=True))
         for k in range(S)])                                         # (S*V_large, V_large)

    key = jax.random.PRNGKey(0)
    ks = jax.random.split(key, 16)
    params = {
        "A_scales":  jnp.asarray(A_scales, dtype=jnp.float32),
        "A_res":     jax.random.uniform(ks[1], (S * V_large, V_large),
                                        minval=-1e-6, maxval=1e-6, dtype=jnp.float32),
        # MLP (Conv2d 1x1 + BN) inside SpatialTemporal_MS_GCN
        "mlp_w":     jax.random.normal(ks[2], (Ce, S * Cin), dtype=jnp.float32) * 0.1,
        "mlp_b":     jax.random.normal(ks[3], (Ce,), dtype=jnp.float32) * 0.1,
        "bn1_gamma": jax.random.uniform(ks[4], (Ce,), minval=0.5, maxval=1.5, dtype=jnp.float32),
        "bn1_beta":  jax.random.normal(ks[5], (Ce,), dtype=jnp.float32) * 0.1,
        "bn1_mean":  jax.random.normal(ks[6], (Ce,), dtype=jnp.float32) * 0.1,
        "bn1_var":   jax.random.uniform(ks[7], (Ce,), minval=0.5, maxval=1.5, dtype=jnp.float32),
        # out_conv Conv3d (Cout, Ce, 1, W, 1) stored squeezed as (Cout, Ce, W)
        "conv3_w":   jax.random.normal(ks[8], (Cout, Ce, W), dtype=jnp.float32) * 0.1,
        "conv3_b":   jax.random.normal(ks[9], (Cout,), dtype=jnp.float32) * 0.1,
        # out_bn BatchNorm2d
        "bn2_gamma": jax.random.uniform(ks[10], (Cout,), minval=0.5, maxval=1.5, dtype=jnp.float32),
        "bn2_beta":  jax.random.normal(ks[11], (Cout,), dtype=jnp.float32) * 0.1,
        "bn2_mean":  jax.random.normal(ks[12], (Cout,), dtype=jnp.float32) * 0.1,
        "bn2_var":   jax.random.uniform(ks[13], (Cout,), minval=0.5, maxval=1.5, dtype=jnp.float32),
    }

    x = jax.random.normal(ks[0], (N, Cin, T, V), dtype=jnp.float32)

    fwd = jax.jit(functools.partial(ms_g3d_pallas_forward, cfg=cfg))
    out = jax.block_until_ready(fwd(x, params))

    ref = jax.block_until_ready(ms_g3d_reference(x, params, cfg))
    assert out.shape == ref.shape, (out.shape, ref.shape)
    # bf16 intermediate + bf16 MXU operands (f32 accumulation) vs fp32-HIGHEST
    # reference -> relaxed tolerance.
    np.testing.assert_allclose(np.asarray(out), np.asarray(ref), rtol=2e-2, atol=2e-2)

    print("KERNEL_OK")
</pallas_src>

<mosaic_0001>
module attributes {stable_mosaic.version = 11 : i64} {
  func.func @_agg_kernel(%arg0: i32, %arg1: memref<24x15xf32, #tpu.memory_space<vmem>>, %arg2: memref<15x128xf32, #tpu.memory_space<vmem>>, %arg3: memref<24x128xbf16, #tpu.memory_space<vmem>>) attributes {dimension_semantics = [#tpu.dimension_semantics<parallel>], iteration_bounds = array<i64: 2>, scalar_prefetch = 0 : i64, scratch_operands = 0 : i64, tpu.core_type = #tpu.core_type<tc>, window_params = [{transform_indices = @transform_0, window_bounds = array<i64: 24, 15>}, {pipeline_mode = #tpu.pipeline_mode<synchronous>, transform_indices = @transform_1, window_bounds = array<i64: 15, 128>}, {transform_indices = @transform_2, window_bounds = array<i64: 24, 128>}]} {
    %c0 = arith.constant 0 : index
    %c0_0 = arith.constant 0 : index
    %0 = vector.load %arg1[%c0, %c0_0] : memref<24x15xf32, #tpu.memory_space<vmem>>, vector<24x15xf32>
    %c0_1 = arith.constant 0 : index
    %c0_2 = arith.constant 0 : index
    %1 = vector.load %arg2[%c0_1, %c0_2] : memref<15x128xf32, #tpu.memory_space<vmem>>, vector<15x128xf32>
    %cst = arith.constant dense<0.000000e+00> : vector<24x128xf32>
    %2 = tpu.matmul %0, %1, %cst {dimension_numbers = #tpu.dot_dimension_numbers<[1], [0], [0], [1], [0, 0, 1, 1], [], []>} : vector<24x15xf32>, vector<15x128xf32>, vector<24x128xf32> -> vector<24x128xf32>
    %3 = arith.truncf %2 : vector<24x128xf32> to vector<24x128xbf16>
    %c0_3 = arith.constant 0 : index
    %c0_4 = arith.constant 0 : index
    %4 = vector.load %arg3[%c0_3, %c0_4] : memref<24x128xbf16, #tpu.memory_space<vmem>>, vector<24x128xbf16>
    tpu.vector_store %arg3[%c0_3, %c0_4], %3 {strides = array<i32>} : memref<24x128xbf16, #tpu.memory_space<vmem>>, vector<24x128xbf16>,
    return
  }
  func.func @transform_0(%arg0: i32) -> (i32, i32) {
    %c0_i32 = arith.constant 0 : i32
    %c0_i32_0 = arith.constant 0 : i32
    return %arg0, %c0_i32 : i32, i32
  }
  func.func @transform_1(%arg0: i32) -> (i32, i32) {
    %c0_i32 = arith.constant 0 : i32
    %c0_i32_0 = arith.constant 0 : i32
    %c0_i32_1 = arith.constant 0 : i32
    return %c0_i32, %c0_i32_0 : i32, i32
  }
  func.func @transform_2(%arg0: i32) -> (i32, i32) {
    %c0_i32 = arith.constant 0 : i32
    %c0_i32_0 = arith.constant 0 : i32
    return %arg0, %c0_i32 : i32, i32
  }
}

module attributes {stable_mosaic.version = 11 : i64} {
  func.func @_mlp2_kernel(%arg0: i32, %arg1: memref<40x18xbf16, #tpu.memory_space<vmem>>, %arg2: memref<18x128xbf16, #tpu.memory_space<vmem>>, %arg3: memref<1x128xf32, #tpu.memory_space<vmem>>, %arg4: memref<128x128xbf16, #tpu.memory_space<vmem>>, %arg5: memref<1x128xf32, #tpu.memory_space<vmem>>, %arg6: memref<40x128xf32, #tpu.memory_space<vmem>>) attributes {dimension_semantics = [#tpu.dimension_semantics<parallel>], iteration_bounds = array<i64: 2>, scalar_prefetch = 0 : i64, scratch_operands = 0 : i64, tpu.core_type = #tpu.core_type<tc>, window_params = [{transform_indices = @transform_0, window_bounds = array<i64: 40, 18>}, {pipeline_mode = #tpu.pipeline_mode<synchronous>, transform_indices = @transform_1, window_bounds = array<i64: 18, 128>}, {pipeline_mode = #tpu.pipeline_mode<synchronous>, transform_indices = @transform_2, window_bounds = array<i64: 1, 128>}, {pipeline_mode = #tpu.pipeline_mode<synchronous>, transform_indices = @transform_3, window_bounds = array<i64: 128, 128>}, {pipeline_mode = #tpu.pipeline_mode<synchronous>, transform_indices = @transform_4, window_bounds = array<i64: 1, 128>}, {transform_indices = @transform_5, window_bounds = array<i64: 40, 128>}]} {
    %c0 = arith.constant 0 : index
    %c0_0 = arith.constant 0 : index
    %0 = vector.load %arg1[%c0, %c0_0] : memref<40x18xbf16, #tpu.memory_space<vmem>>, vector<40x18xbf16>
    %c0_1 = arith.constant 0 : index
    %c0_2 = arith.constant 0 : index
    %1 = vector.load %arg2[%c0_1, %c0_2] : memref<18x128xbf16, #tpu.memory_space<vmem>>, vector<18x128xbf16>
    %cst = arith.constant dense<0.000000e+00> : vector<40x128xf32>
    %2 = tpu.matmul %0, %1, %cst {dimension_numbers = #tpu.dot_dimension_numbers<[1], [0], [0], [1], [0, 0, 1, 1], [], []>} : vector<40x18xbf16>, vector<18x128xbf16>, vector<40x128xf32> -> vector<40x128xf32>
    %c0_3 = arith.constant 0 : index
    %c0_4 = arith.constant 0 : index
    %3 = vector.load %arg3[%c0_3, %c0_4] : memref<1x128xf32, #tpu.memory_space<vmem>>, vector<1x128xf32>
    %4 = vector.broadcast %3 : vector<1x128xf32> to vector<40x128xf32>
    %5 = arith.addf %2, %4 : vector<40x128xf32>
    %cst_5 = arith.constant 0.000000e+00 : f32
    %6 = vector.broadcast %cst_5 : f32 to vector<40x128xf32>
    %7 = arith.maximumf %5, %6 : vector<40x128xf32>
    %8 = arith.truncf %7 : vector<40x128xf32> to vector<40x128xbf16>
    %c0_6 = arith.constant 0 : index
    %c0_7 = arith.constant 0 : index
    %9 = vector.load %arg4[%c0_6, %c0_7] : memref<128x128xbf16, #tpu.memory_space<vmem>>, vector<128x128xbf16>
    %cst_8 = arith.constant dense<0.000000e+00> : vector<40x128xf32>
    %10 = tpu.matmul %8, %9, %cst_8 {dimension_numbers = #tpu.dot_dimension_numbers<[1], [0], [0], [1], [0, 0, 1, 1], [], []>} : vector<40x128xbf16>, vector<128x128xbf16>, vector<40x128xf32> -> vector<40x128xf32>
    %c0_9 = arith.constant 0 : index
    %c0_10 = arith.constant 0 : index
    %11 = vector.load %arg5[%c0_9, %c0_10] : memref<1x128xf32, #tpu.memory_space<vmem>>, vector<1x128xf32>
    %12 = vector.broadcast %11 : vector<1x128xf32> to vector<40x128xf32>
    %13 = arith.addf %10, %12 : vector<40x128xf32>
    %c0_11 = arith.constant 0 : index
    %c0_12 = arith.constant 0 : index
    %14 = vector.load %arg6[%c0_11, %c0_12] : memref<40x128xf32, #tpu.memory_space<vmem>>, vector<40x128xf32>
    tpu.vector_store %arg6[%c0_11, %c0_12], %13 {strides = array<i32>} : memref<40x128xf32, #tpu.memory_space<vmem>>, vector<40x128xf32>,
    return
  }
  func.func @transform_0(%arg0: i32) -> (i32, i32) {
    %c0_i32 = arith.constant 0 : i32
    %c0_i32_0 = arith.constant 0 : i32
    return %arg0, %c0_i32 : i32, i32
  }
  func.func @transform_1(%arg0: i32) -> (i32, i32) {
    %c0_i32 = arith.constant 0 : i32
    %c0_i32_0 = arith.constant 0 : i32
    %c0_i32_1 = arith.constant 0 : i32
    return %c0_i32, %c0_i32_0 : i32, i32
  }
  func.func @transform_2(%arg0: i32) -> (i32, i32) {
    %c0_i32 = arith.constant 0 : i32
    %c0_i32_0 = arith.constant 0 : i32
    %c0_i32_1 = arith.constant 0 : i32
    return %c0_i32, %c0_i32_0 : i32, i32
  }
  func.func @transform_3(%arg0: i32) -> (i32, i32) {
    %c0_i32 = arith.constant 0 : i32
    %c0_i32_0 = arith.constant 0 : i32
    %c0_i32_1 = arith.constant 0 : i32
    return %c0_i32, %c0_i32_0 : i32, i32
  }
  func.func @transform_4(%arg0: i32) -> (i32, i32) {
    %c0_i32 = arith.constant 0 : i32
    %c0_i32_0 = arith.constant 0 : i32
    %c0_i32_1 = arith.constant 0 : i32
    return %c0_i32, %c0_i32_0 : i32, i32
  }
  func.func @transform_5(%arg0: i32) -> (i32, i32) {
    %c0_i32 = arith.constant 0 : i32
    %c0_i32_0 = arith.constant 0 : i32
    return %arg0, %c0_i32 : i32, i32
  }
}

</mosaic_0001>

<llo_original>
// kernel: tile.8
$region0: #{tile.8}
  #allocation0 [shape = 's32[1]{0}', space=sflag, size = 0x4, scoped, tag = 'scoped memory for tile.8']
  %s0 = inlined_call_operand.vmem [shape: f32[16], index: 0, kind: input, shape index: {}]
  %s1 = inlined_call_operand.vmem [shape: f32[3,16], index: 1, kind: output, shape index: {}]
  // Predicated region
  $region2: #{tile.8} parent=0 // pred_check
    _
  $region3: #{tile.8} parent=0 // pred_check_branch
    %3 = sbr.rel (0) target = $region5
  $region4: #{tile.8} parent=0 // pred_region
    _
  $region5: #{tile.8} parent=0 // pred_fallthru
    _
  %v4 = vld [vmem:[%s0] ss:$0 sm:$0xff]
  %5 = vst [vmem:[%s1] sm:$0xf] %v4

// kernel: tile.9
$region0: #{tile.9}
  %s0 = inlined_call_operand.vmem [shape: f32[3,16], index: 0, kind: input, shape index: {}]
  %s1 = inlined_call_operand.vmem [shape: f32[48], index: 1, kind: output, shape index: {}]
  $region1: #{tile.9} parent=0
    #allocation0 [shape = 'u8[4096]{0}', space=vmem, size = 0x1000, scoped, tag = 'scoped mem for output reshape']
    #allocation1 [shape = 'u8[4096]{0}', space=vmem, size = 0x1000, scoped, tag = 'scoped mem for input reshape']
    %s3 = sshll.u32 1, 4
    %s4 = ssub.s32 %s3, 1
    %v5 = vld [vmem:[%s0] sm:%s4]
    %6 = vst [vmem:[#allocation1] sm:%s4] %v5
    %v7 = vld [vmem:[#allocation1] sm:$0x1]
    %vm8 = vcmask 130048
    %9 = vst.msk [vmem:[#allocation0] sm:$0x1] %vm8, %v7
    %s10 = scalar_lea.vmem [#allocation1], 2
    %v11 = vld [vmem:[%s10] sm:$0x1]
    %12 = vrot.lane.b32.xlu0 %v11, 32
    %v13 = vpop.permute.xlu0 %12
    %vm14 = vcmask 392448
    %15 = vst.msk [vmem:[#allocation0] sm:$0x1] %vm14, %v13
    %s16 = scalar_lea.vmem [#allocation1], 1
    %v17 = vld [vmem:[%s16] sm:$0x1]
    %18 = vrot.lane.b32.xlu0 %v17, 16
    %v19 = vpop.permute.xlu0 %18
    %vm20 = vcmask 261248
    %21 = vst.msk [vmem:[#allocation0] sm:$0x1] %vm20, %v19
    %s23 = sshll.u32 1, 1
    %s24 = ssub.s32 %s23, 1
    %v26 = vld [vmem:[#allocation0] sm:%s24]
    %s27 = sshll.u32 1, 1
    %s28 = ssub.s32 %s27, 1
    %29 = vst [vmem:[%s1] sm:%s28] %v26

// kernel: ms_g3d_pallas_forward.2
$region0: #{ms_g3d_pallas_forward.2}
  #allocation0 [shape = 'u32[]', space=smem, size = 0x4, offset = 0x4, fixed_abs, tag = 'smem constant byte address 0x4 - core index']
  #allocation1 [shape = 'u32[144,128]{1,0:T(1,128)}', space=vmem, size = 0x12000, scoped, tag = 'internal scratch']
  %s0 = inlined_call_operand.vmem [shape: f32[48,15], index: 0, kind: input, shape index: {}]
  %s1 = inlined_call_operand.vmem [shape: f32[15,128], index: 1, kind: input, shape index: {}]
  %s2 = inlined_call_operand.vmem [shape: bf16[48,128], index: 2, kind: output, shape index: {}]
  %s3 = sld [smem:[#allocation0]]
  $region41: #{ms_g3d_pallas_forward.2} parent=0
    _
  %s5 = ssub.s32 1, %s3
  %s6 = scalar_select 0, %s5, %s3
  loop: start=0, step=1, limit=4
  $region2: #{ms_g3d_pallas_forward.2} parent=0 // loop_pre_header
    _
  $region3: #{ms_g3d_pallas_forward.2} parent=0 // loop_header
    %s8 = sphi 0, %s12
    %p9 = scmp.ge.s32.totalorder %s8, 4
    %s18 = sphi 0, %s20
    %s21 = sphi 0, %s18
    %s22 = sphi 0, %s21
    %s38 = sphi 0, %s22
    %s42 = sphi 0, %s42
    %s44 = sphi 0, %s42
    %s45 = sphi 0, %s44
    %s59 = sphi 0, %s45
    %s65 = sphi 0, %s67
    %s68 = sphi 0, %s65
    %s69 = sphi 0, %s68
    %s85 = sphi 0, %s69
  $region4: #{ms_g3d_pallas_forward.2} parent=0 // loop_header_branch
    %11 = sbr.rel (%p9) target = $region8
  $region5: #{ms_g3d_pallas_forward.2} parent=0 // loop_body
    %s13 = ssub.s32 %s8, 1
    %s14 = ssub.s32 %s8, 2
    %s15 = sadd.s32 %s8, 1
    %s16 = ssub.s32 %s8, %s15
    %p17 = scmp.eq.s32.totalorder %s16, 0
    %s19 = sadd.s32 %s18, 1
    %s20 = scalar_select %p17, %s18, %s19
    %p23 = pneg %p17
    %p24 = scmp.eq.s32.totalorder %s8, 1
    %p25 = por %p23, %p24
    %p26 = scmp.ne.s32.totalorder %s18, %s21
    %p27 = scmp.eq.s32.totalorder %s8, 0
    %p28 = por %p26, %p27
    %p29 = scmp.ne.s32.totalorder %s18, %s21
    %p30 = scmp.eq.s32.totalorder %s13, 1
    %p31 = por %p29, %p30
    %p32 = scmp.ne.s32.totalorder %s21, %s22
    %p33 = scmp.eq.s32.totalorder %s13, 0
    %p34 = por %p32, %p33
    %p35 = scmp.ne.s32.totalorder %s21, %s22
    %p36 = scmp.eq.s32.totalorder %s14, 1
    %p37 = por %p35, %p36
    %p39 = scmp.ne.s32.totalorder %s22, %s38
    %p40 = scmp.eq.s32.totalorder %s14, 0
    %p41 = por %p39, %p40
    %s43 = sadd.s32 %s42, 1
    %p46 = scmp.eq.s32.totalorder %s8, 1
    %p47 = scmp.ne.s32.totalorder %s42, %s44
    %p48 = scmp.eq.s32.totalorder %s8, 0
    %p49 = por %p47, %p48
    %p50 = scmp.ne.s32.totalorder %s42, %s44
    %p51 = scmp.eq.s32.totalorder %s13, 1
    %p52 = por %p50, %p51
    %p53 = scmp.ne.s32.totalorder %s44, %s45
    %p54 = scmp.eq.s32.totalorder %s13, 0
    %p55 = por %p53, %p54
    %p56 = scmp.ne.s32.totalorder %s44, %s45
    %p57 = scmp.eq.s32.totalorder %s14, 1
    %p58 = por %p56, %p57
    %p60 = scmp.ne.s32.totalorder %s45, %s59
    %p61 = scmp.eq.s32.totalorder %s14, 0
    %p62 = por %p60, %p61
    %s63 = ssub.s32 %s8, %s15
    %p64 = scmp.eq.s32.totalorder %s63, 0
    %s66 = sadd.s32 %s65, 1
    %s67 = scalar_select %p64, %s65, %s66
    %p70 = pneg %p64
    %p71 = scmp.eq.s32.totalorder %s8, 1
    %p72 = por %p70, %p71
    %p73 = scmp.ne.s32.totalorder %s65, %s68
    %p74 = scmp.eq.s32.totalorder %s8, 0
    %p75 = por %p73, %p74
    %p76 = scmp.ne.s32.totalorder %s65, %s68
    %p77 = scmp.eq.s32.totalorder %s13, 1
    %p78 = por %p76, %p77
    %p79 = scmp.ne.s32.totalorder %s68, %s69
    %p80 = scmp.eq.s32.totalorder %s13, 0
    %p81 = por %p79, %p80
    %p82 = scmp.ne.s32.totalorder %s68, %s69
    %p83 = scmp.eq.s32.totalorder %s14, 1
    %p84 = por %p82, %p83
    %p86 = scmp.ne.s32.totalorder %s69, %s85
    %p87 = scmp.eq.s32.totalorder %s14, 0
    %p88 = por %p86, %p87
    %p89 = scmp.le.s32.totalorder 1, %s8
    %p90 = scmp.lt.s32.totalorder %s8, 3
    %p91 = pnand %p89, %p90
    %p92 = pneg %p91
    // Predicated region
    $region9: #{ms_g3d_pallas_forward.2} parent=5 // pred_check
      _
    $region10: #{ms_g3d_pallas_forward.2} parent=5 // pred_check_branch
      %94 = sbr.rel (%p91) target = $region12
    $region11: #{ms_g3d_pallas_forward.2} parent=5 // pred_region
      %s95 = ssub.s32 %s8, 1
      // Predicated region
      $region13: #{ms_g3d_pallas_forward.2} parent=11 // pred_check
        %p96 = pneg %p55
      $region14: #{ms_g3d_pallas_forward.2} parent=11 // pred_check_branch
        %98 = sbr.rel (%p96) target = $region16
      $region15: #{ms_g3d_pallas_forward.2} parent=11 // pred_region
        _
      $region16: #{ms_g3d_pallas_forward.2} parent=11 // pred_fallthru
        _
    $region12: #{ms_g3d_pallas_forward.2} parent=5 // pred_fallthru
      _
    %p99 = scmp.lt.s32.totalorder %s8, 2
    // Predicated region
    $region17: #{ms_g3d_pallas_forward.2} parent=5 // pred_check
      %p100 = pneg %p99
    $region18: #{ms_g3d_pallas_forward.2} parent=5 // pred_check_branch
      %102 = sbr.rel (%p100) target = $region20
    $region19: #{ms_g3d_pallas_forward.2} parent=5 // pred_region
      // Predicated region
      $region21: #{ms_g3d_pallas_forward.2} parent=19 // pred_check
        %p103 = pneg %p28
      $region22: #{ms_g3d_pallas_forward.2} parent=19 // pred_check_branch
        %105 = sbr.rel (%p103) target = $region24
      $region23: #{ms_g3d_pallas_forward.2} parent=19 // pred_region
        %s106 = smul.u32 3, %s8
        %p107 = scmp.lt.s32.totalorder %s106, 5
        %s108 = scalar_select %p107, %s106, 5
        %s109 = smul.addr %s108, 8
        %s110 = scalar_lea.vmem %s0, %s109
        %s111 = smul.u32 3, %s8
      $region24: #{ms_g3d_pallas_forward.2} parent=19 // pred_fallthru
        _
    $region20: #{ms_g3d_pallas_forward.2} parent=5 // pred_fallthru
      _
    %p112 = scmp.le.s32.totalorder 1, %s8
    %p113 = scmp.lt.s32.totalorder %s8, 3
    %p114 = pnand %p112, %p113
    %p115 = pneg %p114
    // Predicated region
    $region25: #{ms_g3d_pallas_forward.2} parent=5 // pred_check
      _
    $region26: #{ms_g3d_pallas_forward.2} parent=5 // pred_check_branch
      %117 = sbr.rel (%p114) target = $region28
    $region27: #{ms_g3d_pallas_forward.2} parent=5 // pred_region
      %s118 = ssub.s32 %s8, 1
      %s119 = smul.u32 3, %s13
      %p120 = scmp.lt.s32.totalorder %s119, 5
      %s121 = scalar_select %p120, %s119, 5
      %s122 = smul.addr %s121, 8
      %s123 = scalar_lea.vmem %s0, %s122
      %p124 = pneg %p34
      %p125 = pneg %p31
      %p126 = pneg %p55
      %p127 = pneg %p52
      %p128 = pneg %p81
      %p129 = pneg %p78
      %s130 = smul.u32 3, %s13
      %p131 = scmp.lt.s32.totalorder %s130, 5
      %s132 = scalar_select %p131, %s130, 5
      %s133 = smul.addr %s132, 4
      %s134 = scalar_lea.vmem %s2, %s133
      %s135 = smul.u32 3, %s13
      %p136 = scmp.lt.s32.totalorder %s135, 5
      %s137 = scalar_select %p136, %s135, 5
      %s138 = smul.addr %s137, 8
      %s139 = scalar_lea.vmem %s0, %s138
      %s140 = smul.u32 3, %s13
      %s141 = smul.u32 3, %s13
      %p142 = scmp.lt.s32.totalorder %s141, 5
      %s143 = scalar_select %p142, %s141, 5
      %s144 = smul.addr %s143, 4
      %s145 = scalar_lea.vmem %s2, %s144
      %s146 = smul.u32 3, %s13
      %v147 = vld [vmem:[%s139] sm:$0xff]
      %v148 = vld [vmem:[%s139 + $0x8] sm:$0xff]
      %v149 = vld [vmem:[%s139 + $0x10] sm:$0xff]
      %v150 = vld [vmem:[%s1] sm:$0xff]
      %v151 = vld [vmem:[%s1 + $0x8] sm:$0x7f]
      %vm152 = vcmask 121856
      %v154 = vsel %vm152, %v147, 0
      %v157 = vsel %vm152, %v148, 0
      %v160 = vsel %vm152, %v149, 0
      %vm162 = vcmask 1046528
      %v164 = vsel %vm162, %v151, 0
      %166 = vmatprep.subr.mxu0 0.0
      %167 = vmatpush1.msra.mxu0 0.0
      %168 = vmatprep.subr.mxu0 0.0
      %169 = vmatpush1.msra.mxu0 0.0
      %170 = vmatprep.subr.mxu0 0.0
      %171 = vmatpush1.msra.mxu0 0.0
      %172 = vmatprep.subr.mxu0 0.0
      %173 = vmatpush1.msra.mxu0 0.0
      %174 = vmatprep.subr.mxu0 0.0
      %175 = vmatpush1.msra.mxu0 0.0
      %176 = vmatprep.subr.mxu0 0.0
      %177 = vmatpush1.msra.mxu0 0.0
      %178 = vmatprep.subr.mxu0 0.0
      %179 = vmatpush1.msra.mxu0 0.0
      %180 = vmatprep.subr.mxu0 0.0
      %181 = vmatpush1.msra.mxu0 0.0
      %182 = vmatprep.subr.mxu0 0.0
      %183 = vmatpush1.msra.mxu0 0.0
      %184 = vmatprep.subr.mxu0 0.0
      %185 = vmatpush1.msra.mxu0 0.0
      %186 = vmatprep.subr.mxu0 0.0
      %187 = vmatpush1.msra.mxu0 0.0
      %188 = vmatprep.subr.mxu0 0.0
      %189 = vmatpush1.msra.mxu0 0.0
      %190 = vmatprep.subr.mxu0 0.0
      %191 = vmatpush1.msra.mxu0 0.0
      %192 = vmatprep.subr.mxu0 0.0
      %193 = vmatpush1.msra.mxu0 0.0
      %194 = vmatprep.subr.mxu0 0.0
      %195 = vmatpush1.msra.mxu0 %v164
      %196 = vmatprep.subr.mxu0 0.0
      %197 = vmatpush1.msra.mxu0 %v150
      %198 = vmatprep.subr.mxu0 0.0
      %199 = vmatpush2.msra.mxu0 0.0
      %200 = vmatprep.subr.mxu0 0.0
      %201 = vmatpush2.msra.mxu0 0.0
      %202 = vmatprep.subr.mxu0 0.0
      %203 = vmatpush2.msra.mxu0 0.0
      %204 = vmatprep.subr.mxu0 0.0
      %205 = vmatpush2.msra.mxu0 0.0
      %206 = vmatprep.subr.mxu0 0.0
      %207 = vmatpush2.msra.mxu0 0.0
      %208 = vmatprep.subr.mxu0 0.0
      %209 = vmatpush2.msra.mxu0 0.0
      %210 = vmatprep.subr.mxu0 0.0
      %211 = vmatpush2.msra.mxu0 0.0
      %212 = vmatprep.subr.mxu0 0.0
      %213 = vmatpush2.msra.mxu0 0.0
      %214 = vmatprep.subr.mxu0 0.0
      %215 = vmatpush2.msra.mxu0 0.0
      %216 = vmatprep.subr.mxu0 0.0
      %217 = vmatpush2.msra.mxu0 0.0
      %218 = vmatprep.subr.mxu0 0.0
      %219 = vmatpush2.msra.mxu0 0.0
      %220 = vmatprep.subr.mxu0 0.0
      %221 = vmatpush2.msra.mxu0 0.0
      %222 = vmatprep.subr.mxu0 0.0
      %223 = vmatpush2.msra.mxu0 0.0
      %224 = vmatprep.subr.mxu0 0.0
      %225 = vmatpush2.msra.mxu0 0.0
      %226 = vmatprep.subr.mxu0 0.0
      %227 = vmatpush2.msra.mxu0 0.0
      %228 = vmatprep.subr.mxu0 0.0
      %229 = vmatpush2.msra.mxu0 0.0
      %230 = vmatprep.mubr.f32.mxu0 0.0
      %231 = vmatmul.mubr.f32.gmra.mxu0 %v154
      %v232 = vpop.f32.mrf.mxu0
      %v233 = vadd.f32 0.0, %v232
      %v234 = vpop.f32.mrf.mxu0
      %235 = vmatprep.mubr.f32.mxu0 0.0
      %236 = vmatmul.mubr.f32.gmra.mxu0 %v157
      %v237 = vpop.f32.mrf.mxu0
      %v238 = vadd.f32 0.0, %v237
      %v239 = vpop.f32.mrf.mxu0
      %240 = vmatprep.mubr.f32.mxu0 0.0
      %241 = vmatmul.mubr.f32.gmra.mxu0 %v160
      %v242 = vpop.f32.mrf.mxu0
      %v243 = vadd.f32 0.0, %v242
      %v244 = vpop.f32.mrf.mxu0
      %245 = vdwg.mxu0
      %v246 = vpack.c.bf16 %v238, %v233
      %v247 = vpack.c.bf16 %v243, %v243
      %v250 = vunpack.c.l.b16 %v246
      %v251 = vunpack.c.h.b16 %v246
      %v252 = vunpack.c.l.b16 %v247
      %v253 = vpack.c.b16 %v250, %v250
      %v254 = vpack.c.b16 %v251, %v251
      %v255 = vpack.c.b16 %v252, %v252
      %259 = vst [vmem:[%s145] sm:$0xf] %v253
      %260 = vst [vmem:[%s145 + $0x4] sm:$0xf] %v254
      %261 = vst [vmem:[%s145 + $0x8] sm:$0xf] %v255
      %s262 = smul.u32 3, %s13
      %p263 = scmp.lt.s32.totalorder %s262, 5
      %s264 = scalar_select %p263, %s262, 5
      %s265 = smul.addr %s264, 4
      %s266 = scalar_lea.vmem %s2, %s265
      // Predicated region
      $region29: #{ms_g3d_pallas_forward.2} parent=27 // pred_check
        %p267 = pneg %p78
      $region30: #{ms_g3d_pallas_forward.2} parent=27 // pred_check_branch
        %269 = sbr.rel (%p267) target = $region32
      $region31: #{ms_g3d_pallas_forward.2} parent=27 // pred_region
        %s270 = smul.u32 3, %s13
      $region32: #{ms_g3d_pallas_forward.2} parent=27 // pred_fallthru
        _
    $region28: #{ms_g3d_pallas_forward.2} parent=5 // pred_fallthru
      _
    %p271 = scmp.le.s32.totalorder 2, %s8
    // Predicated region
    $region33: #{ms_g3d_pallas_forward.2} parent=5 // pred_check
      %p272 = pneg %p271
    $region34: #{ms_g3d_pallas_forward.2} parent=5 // pred_check_branch
      %274 = sbr.rel (%p272) target = $region36
    $region35: #{ms_g3d_pallas_forward.2} parent=5 // pred_region
      %s275 = ssub.s32 %s8, 2
      // Predicated region
      $region37: #{ms_g3d_pallas_forward.2} parent=35 // pred_check
        %p276 = pneg %p84
      $region38: #{ms_g3d_pallas_forward.2} parent=35 // pred_check_branch
        %278 = sbr.rel (%p276) target = $region40
      $region39: #{ms_g3d_pallas_forward.2} parent=35 // pred_region
        %s279 = smul.u32 3, %s14
        %p280 = scmp.lt.s32.totalorder %s279, 5
        %s281 = scalar_select %p280, %s279, 5
        %s282 = smul.addr %s281, 4
        %s283 = scalar_lea.vmem %s2, %s282
      $region40: #{ms_g3d_pallas_forward.2} parent=35 // pred_fallthru
        _
    $region36: #{ms_g3d_pallas_forward.2} parent=5 // pred_fallthru
      _
  $region6: #{ms_g3d_pallas_forward.2} parent=0 // loop_footer
    %s12 = sadd.s32 1, %s8
  $region7: #{ms_g3d_pallas_forward.2} parent=0 // loop_footer_branch
    %7 = sbr.rel target = $region3
  $region8: #{ms_g3d_pallas_forward.2} parent=0 // loop_exit
    _

// kernel: ms_g3d_pallas_forward.3
$region0: #{ms_g3d_pallas_forward.3}
  #allocation0 [shape = 'u32[]', space=smem, size = 0x4, offset = 0x4, fixed_abs, tag = 'smem constant byte address 0x4 - core index']
  #allocation1 [shape = 'u32[144,128]{1,0:T(1,128)}', space=vmem, size = 0x12000, scoped, tag = 'internal scratch']
  %s0 = inlined_call_operand.vmem [shape: bf16[80,18], index: 0, kind: input, shape index: {}]
  %s1 = inlined_call_operand.vmem [shape: bf16[18,128], index: 1, kind: input, shape index: {}]
  %s2 = inlined_call_operand.vmem [shape: f32[1,128], index: 2, kind: input, shape index: {}]
  %s3 = inlined_call_operand.vmem [shape: bf16[128,128], index: 3, kind: input, shape index: {}]
  %s4 = inlined_call_operand.vmem [shape: f32[1,128], index: 4, kind: input, shape index: {}]
  %s5 = inlined_call_operand.vmem [shape: f32[80,128], index: 5, kind: output, shape index: {}]
  %s6 = sld [smem:[#allocation0]]
  $region53: #{ms_g3d_pallas_forward.3} parent=0
    _
  %s8 = ssub.s32 1, %s6
  %s9 = scalar_select 0, %s8, %s6
  loop: start=0, step=1, limit=4
  $region2: #{ms_g3d_pallas_forward.3} parent=0 // loop_pre_header
    _
  $region3: #{ms_g3d_pallas_forward.3} parent=0 // loop_header
    %s11 = sphi 0, %s15
    %p12 = scmp.ge.s32.totalorder %s11, 4
    %s21 = sphi 0, %s23
    %s24 = sphi 0, %s21
    %s25 = sphi 0, %s24
    %s41 = sphi 0, %s25
    %s45 = sphi 0, %s45
    %s47 = sphi 0, %s45
    %s48 = sphi 0, %s47
    %s62 = sphi 0, %s48
    %s66 = sphi 0, %s66
    %s68 = sphi 0, %s66
    %s69 = sphi 0, %s68
    %s83 = sphi 0, %s69
    %s87 = sphi 0, %s87
    %s89 = sphi 0, %s87
    %s90 = sphi 0, %s89
    %s104 = sphi 0, %s90
    %s108 = sphi 0, %s108
    %s110 = sphi 0, %s108
    %s111 = sphi 0, %s110
    %s125 = sphi 0, %s111
    %s131 = sphi 0, %s133
    %s134 = sphi 0, %s131
    %s135 = sphi 0, %s134
    %s151 = sphi 0, %s135
  $region4: #{ms_g3d_pallas_forward.3} parent=0 // loop_header_branch
    %14 = sbr.rel (%p12) target = $region8
  $region5: #{ms_g3d_pallas_forward.3} parent=0 // loop_body
    %s16 = ssub.s32 %s11, 1
    %s17 = ssub.s32 %s11, 2
    %s18 = sadd.s32 %s11, 1
    %s19 = ssub.s32 %s11, %s18
    %p20 = scmp.eq.s32.totalorder %s19, 0
    %s22 = sadd.s32 %s21, 1
    %s23 = scalar_select %p20, %s21, %s22
    %p26 = pneg %p20
    %p27 = scmp.eq.s32.totalorder %s11, 1
    %p28 = por %p26, %p27
    %p29 = scmp.ne.s32.totalorder %s21, %s24
    %p30 = scmp.eq.s32.totalorder %s11, 0
    %p31 = por %p29, %p30
    %p32 = scmp.ne.s32.totalorder %s21, %s24
    %p33 = scmp.eq.s32.totalorder %s16, 1
    %p34 = por %p32, %p33
    %p35 = scmp.ne.s32.totalorder %s24, %s25
    %p36 = scmp.eq.s32.totalorder %s16, 0
    %p37 = por %p35, %p36
    %p38 = scmp.ne.s32.totalorder %s24, %s25
    %p39 = scmp.eq.s32.totalorder %s17, 1
    %p40 = por %p38, %p39
    %p42 = scmp.ne.s32.totalorder %s25, %s41
    %p43 = scmp.eq.s32.totalorder %s17, 0
    %p44 = por %p42, %p43
    %s46 = sadd.s32 %s45, 1
    %p49 = scmp.eq.s32.totalorder %s11, 1
    %p50 = scmp.ne.s32.totalorder %s45, %s47
    %p51 = scmp.eq.s32.totalorder %s11, 0
    %p52 = por %p50, %p51
    %p53 = scmp.ne.s32.totalorder %s45, %s47
    %p54 = scmp.eq.s32.totalorder %s16, 1
    %p55 = por %p53, %p54
    %p56 = scmp.ne.s32.totalorder %s47, %s48
    %p57 = scmp.eq.s32.totalorder %s16, 0
    %p58 = por %p56, %p57
    %p59 = scmp.ne.s32.totalorder %s47, %s48
    %p60 = scmp.eq.s32.totalorder %s17, 1
    %p61 = por %p59, %p60
    %p63 = scmp.ne.s32.totalorder %s48, %s62
    %p64 = scmp.eq.s32.totalorder %s17, 0
    %p65 = por %p63, %p64
    %s67 = sadd.s32 %s66, 1
    %p70 = scmp.eq.s32.totalorder %s11, 1
    %p71 = scmp.ne.s32.totalorder %s66, %s68
    %p72 = scmp.eq.s32.totalorder %s11, 0
    %p73 = por %p71, %p72
    %p74 = scmp.ne.s32.totalorder %s66, %s68
    %p75 = scmp.eq.s32.totalorder %s16, 1
    %p76 = por %p74, %p75
    %p77 = scmp.ne.s32.totalorder %s68, %s69
    %p78 = scmp.eq.s32.totalorder %s16, 0
    %p79 = por %p77, %p78
    %p80 = scmp.ne.s32.totalorder %s68, %s69
    %p81 = scmp.eq.s32.totalorder %s17, 1
    %p82 = por %p80, %p81
    %p84 = scmp.ne.s32.totalorder %s69, %s83
    %p85 = scmp.eq.s32.totalorder %s17, 0
    %p86 = por %p84, %p85
    %s88 = sadd.s32 %s87, 1
    %p91 = scmp.eq.s32.totalorder %s11, 1
    %p92 = scmp.ne.s32.totalorder %s87, %s89
    %p93 = scmp.eq.s32.totalorder %s11, 0
    %p94 = por %p92, %p93
    %p95 = scmp.ne.s32.totalorder %s87, %s89
    %p96 = scmp.eq.s32.totalorder %s16, 1
    %p97 = por %p95, %p96
    %p98 = scmp.ne.s32.totalorder %s89, %s90
    %p99 = scmp.eq.s32.totalorder %s16, 0
    %p100 = por %p98, %p99
    %p101 = scmp.ne.s32.totalorder %s89, %s90
    %p102 = scmp.eq.s32.totalorder %s17, 1
    %p103 = por %p101, %p102
    %p105 = scmp.ne.s32.totalorder %s90, %s104
    %p106 = scmp.eq.s32.totalorder %s17, 0
    %p107 = por %p105, %p106
    %s109 = sadd.s32 %s108, 1
    %p112 = scmp.eq.s32.totalorder %s11, 1
    %p113 = scmp.ne.s32.totalorder %s108, %s110
    %p114 = scmp.eq.s32.totalorder %s11, 0
    %p115 = por %p113, %p114
    %p116 = scmp.ne.s32.totalorder %s108, %s110
    %p117 = scmp.eq.s32.totalorder %s16, 1
    %p118 = por %p116, %p117
    %p119 = scmp.ne.s32.totalorder %s110, %s111
    %p120 = scmp.eq.s32.totalorder %s16, 0
    %p121 = por %p119, %p120
    %p122 = scmp.ne.s32.totalorder %s110, %s111
    %p123 = scmp.eq.s32.totalorder %s17, 1
    %p124 = por %p122, %p123
    %p126 = scmp.ne.s32.totalorder %s111, %s125
    %p127 = scmp.eq.s32.totalorder %s17, 0
    %p128 = por %p126, %p127
    %s129 = ssub.s32 %s11, %s18
    %p130 = scmp.eq.s32.totalorder %s129, 0
    %s132 = sadd.s32 %s131, 1
    %s133 = scalar_select %p130, %s131, %s132
    %p136 = pneg %p130
    %p137 = scmp.eq.s32.totalorder %s11, 1
    %p138 = por %p136, %p137
    %p139 = scmp.ne.s32.totalorder %s131, %s134
    %p140 = scmp.eq.s32.totalorder %s11, 0
    %p141 = por %p139, %p140
    %p142 = scmp.ne.s32.totalorder %s131, %s134
    %p143 = scmp.eq.s32.totalorder %s16, 1
    %p144 = por %p142, %p143
    %p145 = scmp.ne.s32.totalorder %s134, %s135
    %p146 = scmp.eq.s32.totalorder %s16, 0
    %p147 = por %p145, %p146
    %p148 = scmp.ne.s32.totalorder %s134, %s135
    %p149 = scmp.eq.s32.totalorder %s17, 1
    %p150 = por %p148, %p149
    %p152 = scmp.ne.s32.totalorder %s135, %s151
    %p153 = scmp.eq.s32.totalorder %s17, 0
    %p154 = por %p152, %p153
    %p155 = scmp.le.s32.totalorder 1, %s11
    %p156 = scmp.lt.s32.totalorder %s11, 3
    %p157 = pnand %p155, %p156
    %p158 = pneg %p157
    // Predicated region
    $region9: #{ms_g3d_pallas_forward.3} parent=5 // pred_check
      _
    $region10: #{ms_g3d_pallas_forward.3} parent=5 // pred_check_branch
      %160 = sbr.rel (%p157) target = $region12
    $region11: #{ms_g3d_pallas_forward.3} parent=5 // pred_region
      %s161 = ssub.s32 %s11, 1
      // Predicated region
      $region13: #{ms_g3d_pallas_forward.3} parent=11 // pred_check
        %p162 = pneg %p58
      $region14: #{ms_g3d_pallas_forward.3} parent=11 // pred_check_branch
        %164 = sbr.rel (%p162) target = $region16
      $region15: #{ms_g3d_pallas_forward.3} parent=11 // pred_region
        _
      $region16: #{ms_g3d_pallas_forward.3} parent=11 // pred_fallthru
        _
      // Predicated region
      $region17: #{ms_g3d_pallas_forward.3} parent=11 // pred_check
        %p165 = pneg %p79
      $region18: #{ms_g3d_pallas_forward.3} parent=11 // pred_check_branch
        %167 = sbr.rel (%p165) target = $region20
      $region19: #{ms_g3d_pallas_forward.3} parent=11 // pred_region
        _
      $region20: #{ms_g3d_pallas_forward.3} parent=11 // pred_fallthru
        _
      // Predicated region
      $region21: #{ms_g3d_pallas_forward.3} parent=11 // pred_check
        %p168 = pneg %p100
      $region22: #{ms_g3d_pallas_forward.3} parent=11 // pred_check_branch
        %170 = sbr.rel (%p168) target = $region24
      $region23: #{ms_g3d_pallas_forward.3} parent=11 // pred_region
        _
      $region24: #{ms_g3d_pallas_forward.3} parent=11 // pred_fallthru
        _
      // Predicated region
      $region25: #{ms_g3d_pallas_forward.3} parent=11 // pred_check
        %p171 = pneg %p121
      $region26: #{ms_g3d_pallas_forward.3} parent=11 // pred_check_branch
        %173 = sbr.rel (%p171) target = $region28
      $region27: #{ms_g3d_pallas_forward.3} parent=11 // pred_region
        _
      $region28: #{ms_g3d_pallas_forward.3} parent=11 // pred_fallthru
        _
    $region12: #{ms_g3d_pallas_forward.3} parent=5 // pred_fallthru
      _
    %p174 = scmp.lt.s32.totalorder %s11, 2
    // Predicated region
    $region29: #{ms_g3d_pallas_forward.3} parent=5 // pred_check
      %p175 = pneg %p174
    $region30: #{ms_g3d_pallas_forward.3} parent=5 // pred_check_branch
      %177 = sbr.rel (%p175) target = $region32
    $region31: #{ms_g3d_pallas_forward.3} parent=5 // pred_region
      // Predicated region
      $region33: #{ms_g3d_pallas_forward.3} parent=31 // pred_check
        %p178 = pneg %p31
      $region34: #{ms_g3d_pallas_forward.3} parent=31 // pred_check_branch
        %180 = sbr.rel (%p178) target = $region36
      $region35: #{ms_g3d_pallas_forward.3} parent=31 // pred_region
        %s181 = smul.u32 5, %s11
        %p182 = scmp.lt.s32.totalorder %s181, 9
        %s183 = scalar_select %p182, %s181, 9
        %s184 = smul.addr %s183, 4
        %s185 = scalar_lea.vmem %s0, %s184
        %s186 = smul.u32 5, %s11
      $region36: #{ms_g3d_pallas_forward.3} parent=31 // pred_fallthru
        _
    $region32: #{ms_g3d_pallas_forward.3} parent=5 // pred_fallthru
      _
    %p187 = scmp.le.s32.totalorder 1, %s11
    %p188 = scmp.lt.s32.totalorder %s11, 3
    %p189 = pnand %p187, %p188
    %p190 = pneg %p189
    // Predicated region
    $region37: #{ms_g3d_pallas_forward.3} parent=5 // pred_check
      _
    $region38: #{ms_g3d_pallas_forward.3} parent=5 // pred_check_branch
      %192 = sbr.rel (%p189) target = $region40
    $region39: #{ms_g3d_pallas_forward.3} parent=5 // pred_region
      %s193 = ssub.s32 %s11, 1
      %s194 = smul.u32 5, %s16
      %p195 = scmp.lt.s32.totalorder %s194, 9
      %s196 = scalar_select %p195, %s194, 9
      %s197 = smul.addr %s196, 4
      %s198 = scalar_lea.vmem %s0, %s197
      %p199 = pneg %p37
      %p200 = pneg %p34
      %p201 = pneg %p58
      %p202 = pneg %p55
      %p203 = pneg %p79
      %p204 = pneg %p76
      %p205 = pneg %p100
      %p206 = pneg %p97
      %p207 = pneg %p121
      %p208 = pneg %p118
      %p209 = pneg %p147
      %p210 = pneg %p144
      %s211 = smul.u32 5, %s16
      %p212 = scmp.lt.s32.totalorder %s211, 9
      %s213 = scalar_select %p212, %s211, 9
      %s214 = smul.addr %s213, 8
      %s215 = scalar_lea.vmem %s5, %s214
      %s216 = smul.u32 5, %s16
      %p217 = scmp.lt.s32.totalorder %s216, 9
      %s218 = scalar_select %p217, %s216, 9
      %s219 = smul.addr %s218, 4
      %s220 = scalar_lea.vmem %s0, %s219
      %s221 = smul.u32 5, %s16
      %s222 = smul.u32 5, %s16
      %p223 = scmp.lt.s32.totalorder %s222, 9
      %s224 = scalar_select %p223, %s222, 9
      %s225 = smul.addr %s224, 8
      %s226 = scalar_lea.vmem %s5, %s225
      %s227 = smul.u32 5, %s16
      %v229 = vld [vmem:[%s220] sm:$0xf]
      %v230 = vld [vmem:[%s220 + $0x4] sm:$0xf]
      %v231 = vld [vmem:[%s220 + $0x8] sm:$0xf]
      %v232 = vld [vmem:[%s220 + $0xc] sm:$0xf]
      %v233 = vld [vmem:[%s220 + $0x10] sm:$0xf]
      %v234 = vld [vmem:[%s1] sm:$0xf]
      %v235 = vld [vmem:[%s1 + $0x4] sm:$0xf]
      %v236 = vld [vmem:[%s1 + $0x8] sm:$0x1]
      %v237 = vld [vmem:[%s2] sm:$0x1]
      %v239 = vlaneseq
      %v240 = vshrl.u32 %v239, 7
      %v241 = vsub.s32 0, %v240
      %v242 = vrot.slane %v237, %v241
      %v249 = vunpack.c.l.b16 %v229
      %v250 = vunpack.c.l.b16 %v230
      %v251 = vunpack.c.l.b16 %v231
      %v252 = vunpack.c.l.b16 %v232
      %v253 = vunpack.c.l.b16 %v233
      %v254 = vpack.c.b16 %v250, %v249
      %v255 = vpack.c.b16 %v252, %v251
      %v256 = vpack.c.b16 %v253, %v253
      %v260 = vunpack.c.l.b16 %v234
      %v261 = vunpack.c.l.b16 %v235
      %v262 = vunpack.c.l.b16 %v236
      %v263 = vpack.c.b16 %v261, %v260
      %v264 = vpack.c.b16 %v262, %v262
      %vm266 = vcmask 146432
      %v268 = vsel %vm266, %v254, 0
      %v271 = vsel %vm266, %v255, 0
      %v274 = vsel %vm266, %v256, 0
      %vm276 = vcmask 1040384
      %v278 = vsel %vm276, %v264, 0
      %280 = vmatprep.subr.bf16.mxu0 0
      %281 = vmatpush1.bf16.msra.mxu0 0
      %282 = vmatprep.subr.bf16.mxu0 0
      %283 = vmatpush1.bf16.msra.mxu0 0
      %284 = vmatprep.subr.bf16.mxu0 0
      %285 = vmatpush1.bf16.msra.mxu0 0
      %286 = vmatprep.subr.bf16.mxu0 0
      %287 = vmatpush1.bf16.msra.mxu0 0
      %288 = vmatprep.subr.bf16.mxu0 0
      %289 = vmatpush1.bf16.msra.mxu0 0
      %290 = vmatprep.subr.bf16.mxu0 0
      %291 = vmatpush1.bf16.msra.mxu0 0
      %292 = vmatprep.subr.bf16.mxu0 0
      %293 = vmatpush1.bf16.msra.mxu0 %v278
      %294 = vmatprep.subr.bf16.mxu0 0
      %295 = vmatpush1.bf16.msra.mxu0 %v263
      %296 = vmatprep.subr.bf16.mxu0 0
      %297 = vmatpush2.bf16.msra.mxu0 0
      %298 = vmatprep.subr.bf16.mxu0 0
      %299 = vmatpush2.bf16.msra.mxu0 0
      %300 = vmatprep.subr.bf16.mxu0 0
      %301 = vmatpush2.bf16.msra.mxu0 0
      %302 = vmatprep.subr.bf16.mxu0 0
      %303 = vmatpush2.bf16.msra.mxu0 0
      %304 = vmatprep.subr.bf16.mxu0 0
      %305 = vmatpush2.bf16.msra.mxu0 0
      %306 = vmatprep.subr.bf16.mxu0 0
      %307 = vmatpush2.bf16.msra.mxu0 0
      %308 = vmatprep.subr.bf16.mxu0 0
      %309 = vmatpush2.bf16.msra.mxu0 0
      %310 = vmatprep.subr.bf16.mxu0 0
      %311 = vmatpush2.bf16.msra.mxu0 0
      %312 = vmatprep.mubr.bf16.mxu0 0
      %313 = vmatmul.mubr.bf16.gmra.mxu0 %v268
      %v314 = vpop.f32.mrf.mxu0
      %v315 = vadd.f32 %v242, %v314
      %v316 = vpop.f32.mrf.mxu0
      %v317 = vpop.f32.mrf.mxu0
      %v318 = vadd.f32 %v242, %v317
      %v319 = vpop.f32.mrf.mxu0
      %320 = vmatprep.mubr.bf16.mxu0 0
      %321 = vmatmul.mubr.bf16.gmra.mxu0 %v271
      %v322 = vpop.f32.mrf.mxu0
      %v323 = vadd.f32 %v242, %v322
      %v324 = vpop.f32.mrf.mxu0
      %v325 = vpop.f32.mrf.mxu0
      %v326 = vadd.f32 %v242, %v325
      %v327 = vpop.f32.mrf.mxu0
      %328 = vmatprep.mubr.bf16.mxu0 0
      %329 = vmatmul.mubr.bf16.gmra.mxu0 %v274
      %v330 = vpop.f32.mrf.mxu0
      %v331 = vadd.f32 %v242, %v330
      %v332 = vpop.f32.mrf.mxu0
      %v333 = vpop.f32.mrf.mxu0
      %v334 = vpop.f32.mrf.mxu0
      %335 = vdwg.mxu0
      %v336 = vmax.f32 %v315, 0.0
      %v337 = vmax.f32 %v318, 0.0
      %v338 = vmax.f32 %v323, 0.0
      %v339 = vmax.f32 %v326, 0.0
      %v340 = vmax.f32 %v331, 0.0
      %v341 = vpack.c.bf16 %v337, %v336
      %v342 = vpack.c.bf16 %v339, %v338
      %v343 = vpack.c.bf16 %v340, %v340
      %v344 = vld [vmem:[%s3] sm:$0xf]
      %v345 = vld [vmem:[%s3 + $0x4] sm:$0xf]
      %v346 = vld [vmem:[%s3 + $0x8] sm:$0xf]
      %v347 = vld [vmem:[%s3 + $0xc] sm:$0xf]
      %v348 = vld [vmem:[%s3 + $0x10] sm:$0xf]
      %v349 = vld [vmem:[%s3 + $0x14] sm:$0xf]
      %v350 = vld [vmem:[%s3 + $0x18] sm:$0xf]
      %v351 = vld [vmem:[%s3 + $0x1c] sm:$0xf]
      %v352 = vld [vmem:[%s3 + $0x20] sm:$0xf]
      %v353 = vld [vmem:[%s3 + $0x24] sm:$0xf]
      %v354 = vld [vmem:[%s3 + $0x28] sm:$0xf]
      %v355 = vld [vmem:[%s3 + $0x2c] sm:$0xf]
      %v356 = vld [vmem:[%s3 + $0x30] sm:$0xf]
      %v357 = vld [vmem:[%s3 + $0x34] sm:$0xf]
      %v358 = vld [vmem:[%s3 + $0x38] sm:$0xf]
      %v359 = vld [vmem:[%s3 + $0x3c] sm:$0xf]
      %v360 = vld [vmem:[%s4] sm:$0x1]
      %v362 = vlaneseq
      %v363 = vshrl.u32 %v362, 7
      %v364 = vsub.s32 0, %v363
      %v365 = vrot.slane %v360, %v364
      %v383 = vunpack.c.l.b16 %v344
      %v384 = vunpack.c.l.b16 %v345
      %v385 = vunpack.c.l.b16 %v346
      %v386 = vunpack.c.l.b16 %v347
      %v387 = vunpack.c.l.b16 %v348
      %v388 = vunpack.c.l.b16 %v349
      %v389 = vunpack.c.l.b16 %v350
      %v390 = vunpack.c.l.b16 %v351
      %v391 = vunpack.c.l.b16 %v352
      %v392 = vunpack.c.l.b16 %v353
      %v393 = vunpack.c.l.b16 %v354
      %v394 = vunpack.c.l.b16 %v355
      %v395 = vunpack.c.l.b16 %v356
      %v396 = vunpack.c.l.b16 %v357
      %v397 = vunpack.c.l.b16 %v358
      %v398 = vunpack.c.l.b16 %v359
      %v399 = vpack.c.b16 %v384, %v383
      %v400 = vpack.c.b16 %v386, %v385
      %v401 = vpack.c.b16 %v388, %v387
      %v402 = vpack.c.b16 %v390, %v389
      %v403 = vpack.c.b16 %v392, %v391
      %v404 = vpack.c.b16 %v394, %v393
      %v405 = vpack.c.b16 %v396, %v395
      %v406 = vpack.c.b16 %v398, %v397
      %415 = vmatprep.subr.bf16.mxu0 0
      %416 = vmatpush1.bf16.msra.mxu0 %v406
      %417 = vmatprep.subr.bf16.mxu0 0
      %418 = vmatpush1.bf16.msra.mxu0 %v405
      %419 = vmatprep.subr.bf16.mxu0 0
      %420 = vmatpush1.bf16.msra.mxu0 %v404
      %421 = vmatprep.subr.bf16.mxu0 0
      %422 = vmatpush1.bf16.msra.mxu0 %v403
      %423 = vmatprep.subr.bf16.mxu0 0
      %424 = vmatpush1.bf16.msra.mxu0 %v402
      %425 = vmatprep.subr.bf16.mxu0 0
      %426 = vmatpush1.bf16.msra.mxu0 %v401
      %427 = vmatprep.subr.bf16.mxu0 0
      %428 = vmatpush1.bf16.msra.mxu0 %v400
      %429 = vmatprep.subr.bf16.mxu0 0
      %430 = vmatpush1.bf16.msra.mxu0 %v399
      %431 = vmatprep.subr.bf16.mxu0 0
      %432 = vmatpush2.bf16.msra.mxu0 0
      %433 = vmatprep.subr.bf16.mxu0 0
      %434 = vmatpush2.bf16.msra.mxu0 0
      %435 = vmatprep.subr.bf16.mxu0 0
      %436 = vmatpush2.bf16.msra.mxu0 0
      %437 = vmatprep.subr.bf16.mxu0 0
      %438 = vmatpush2.bf16.msra.mxu0 0
      %439 = vmatprep.subr.bf16.mxu0 0
      %440 = vmatpush2.bf16.msra.mxu0 0
      %441 = vmatprep.subr.bf16.mxu0 0
      %442 = vmatpush2.bf16.msra.mxu0 0
      %443 = vmatprep.subr.bf16.mxu0 0
      %444 = vmatpush2.bf16.msra.mxu0 0
      %445 = vmatprep.subr.bf16.mxu0 0
      %446 = vmatpush2.bf16.msra.mxu0 0
      %447 = vmatprep.mubr.bf16.mxu0 0
      %448 = vmatmul.mubr.bf16.gmra.mxu0 %v341
      %v449 = vpop.f32.mrf.mxu0
      %v450 = vadd.f32 %v365, %v449
      %v451 = vpop.f32.mrf.mxu0
      %v452 = vpop.f32.mrf.mxu0
      %v453 = vadd.f32 %v365, %v452
      %v454 = vpop.f32.mrf.mxu0
      %455 = vmatprep.mubr.bf16.mxu0 0
      %456 = vmatmul.mubr.bf16.gmra.mxu0 %v342
      %v457 = vpop.f32.mrf.mxu0
      %v458 = vadd.f32 %v365, %v457
      %v459 = vpop.f32.mrf.mxu0
      %v460 = vpop.f32.mrf.mxu0
      %v461 = vadd.f32 %v365, %v460
      %v462 = vpop.f32.mrf.mxu0
      %463 = vmatprep.mubr.bf16.mxu0 0
      %464 = vmatmul.mubr.bf16.gmra.mxu0 %v343
      %v465 = vpop.f32.mrf.mxu0
      %v466 = vadd.f32 %v365, %v465
      %v467 = vpop.f32.mrf.mxu0
      %v468 = vpop.f32.mrf.mxu0
      %v469 = vpop.f32.mrf.mxu0
      %470 = vdwg.mxu0
      %471 = vst [vmem:[%s226] sm:$0xff] %v450
      %472 = vst [vmem:[%s226 + $0x8] sm:$0xff] %v453
      %473 = vst [vmem:[%s226 + $0x10] sm:$0xff] %v458
      %474 = vst [vmem:[%s226 + $0x18] sm:$0xff] %v461
      %475 = vst [vmem:[%s226 + $0x20] sm:$0xff] %v466
      %s476 = smul.u32 5, %s16
      %p477 = scmp.lt.s32.totalorder %s476, 9
      %s478 = scalar_select %p477, %s476, 9
      %s479 = smul.addr %s478, 8
      %s480 = scalar_lea.vmem %s5, %s479
      // Predicated region
      $region41: #{ms_g3d_pallas_forward.3} parent=39 // pred_check
        %p481 = pneg %p144
      $region42: #{ms_g3d_pallas_forward.3} parent=39 // pred_check_branch
        %483 = sbr.rel (%p481) target = $region44
      $region43: #{ms_g3d_pallas_forward.3} parent=39 // pred_region
        %s484 = smul.u32 5, %s16
      $region44: #{ms_g3d_pallas_forward.3} parent=39 // pred_fallthru
        _
    $region40: #{ms_g3d_pallas_forward.3} parent=5 // pred_fallthru
      _
    %p485 = scmp.le.s32.totalorder 2, %s11
    // Predicated region
    $region45: #{ms_g3d_pallas_forward.3} parent=5 // pred_check
      %p486 = pneg %p485
    $region46: #{ms_g3d_pallas_forward.3} parent=5 // pred_check_branch
      %488 = sbr.rel (%p486) target = $region48
    $region47: #{ms_g3d_pallas_forward.3} parent=5 // pred_region
      %s489 = ssub.s32 %s11, 2
      // Predicated region
      $region49: #{ms_g3d_pallas_forward.3} parent=47 // pred_check
        %p490 = pneg %p150
      $region50: #{ms_g3d_pallas_forward.3} parent=47 // pred_check_branch
        %492 = sbr.rel (%p490) target = $region52
      $region51: #{ms_g3d_pallas_forward.3} parent=47 // pred_region
        %s493 = smul.u32 5, %s17
        %p494 = scmp.lt.s32.totalorder %s493, 9
        %s495 = scalar_select %p494, %s493, 9
        %s496 = smul.addr %s495, 8
        %s497 = scalar_lea.vmem %s5, %s496
      $region52: #{ms_g3d_pallas_forward.3} parent=47 // pred_fallthru
        _
    $region48: #{ms_g3d_pallas_forward.3} parent=5 // pred_fallthru
      _
  $region6: #{ms_g3d_pallas_forward.3} parent=0 // loop_footer
    %s15 = sadd.s32 1, %s11
  $region7: #{ms_g3d_pallas_forward.3} parent=0 // loop_footer_branch
    %10 = sbr.rel target = $region3
  $region8: #{ms_g3d_pallas_forward.3} parent=0 // loop_exit
    _

</llo_original>
